<compile_context>
chip_gen: v5e
topology: v5e:2x2
jax: 0.10.0
libtpu: 0.0.40
codegen_flags: <defaults>
</compile_context>

<pallas_src>
import jax
import jax.numpy as jnp
from jax.experimental import pallas as pl
from jax.experimental.pallas import tpu as pltpu


def _round_up(n, m):
    return ((n + m - 1) // m) * m


# ---------------------------------------------------------------------------
# Kernel
# ---------------------------------------------------------------------------
def _mlp_decoder_kernel(x_ref, w0_ref, b0_ref, w1_ref, b1_ref, w2_ref, b2_ref,
                        out_ref):
    """Fused 3-linear MLP: tanh(tanh(x@W0+b0)@W1+b1)@W2+b2 (identity head)."""
    x = x_ref[...].astype(w0_ref.dtype)              # f32 HBM read, bf16 cast in VMEM
    h = jnp.dot(x, w0_ref[...], preferred_element_type=jnp.float32)
    h = jnp.tanh(h + b0_ref[...])                    # f32 tanh (EUP)
    h = jnp.dot(h.astype(w1_ref.dtype), w1_ref[...],
                preferred_element_type=jnp.float32)
    h = jnp.tanh(h + b1_ref[...])
    o = jnp.dot(h.astype(w2_ref.dtype), w2_ref[...],
                preferred_element_type=jnp.float32)
    out_ref[...] = (o + b2_ref[...]).astype(out_ref.dtype)


# ---------------------------------------------------------------------------
# One-time parameter prep (hoisted out of the per-call hot path)
# ---------------------------------------------------------------------------
def prepare_params(params, compute_dtype=jnp.bfloat16):
    """Cast weights to bf16 and zero-pad the hidden dim to a multiple of 128.

    Zeros propagate exactly: tanh(0) = 0 and zero rows of W1/W2 contribute
    nothing, so padding never changes the result.
    """
    cin, hid = params["w0"].shape
    out = params["w2"].shape[1]
    hid_pad = _round_up(hid, 128)
    dp = hid_pad - hid

    w0 = params["w0"].astype(compute_dtype)
    w1 = params["w1"].astype(compute_dtype)
    w2 = params["w2"].astype(compute_dtype)
    b0 = params["b0"].reshape(1, hid).astype(jnp.float32)
    b1 = params["b1"].reshape(1, hid).astype(jnp.float32)
    b2 = params["b2"].reshape(1, out).astype(jnp.float32)
    if dp:
        w0 = jnp.pad(w0, ((0, 0), (0, dp)))
        b0 = jnp.pad(b0, ((0, 0), (0, dp)))
        w1 = jnp.pad(w1, ((0, dp), (0, dp)))
        b1 = jnp.pad(b1, ((0, 0), (0, dp)))
        w2 = jnp.pad(w2, ((0, dp), (0, 0)))
    return dict(w0=w0, b0=b0, w1=w1, b1=b1, w2=w2, b2=b2)


# ---------------------------------------------------------------------------
# Hardware queries (best-effort, with conservative fallbacks)
# ---------------------------------------------------------------------------
def _tpu_vmem_capacity_bytes():
    try:
        return int(pltpu.get_tpu_info().vmem_capacity_bytes)
    except Exception:
        return 64 << 20          # conservative (v7x-sized) fallback


def _is_v7x():
    try:
        return "7" in jax.devices()[0].device_kind.lower()
    except Exception:
        return False


# ---------------------------------------------------------------------------
# Wrapper
# ---------------------------------------------------------------------------
def mlp_decoder_mean(x, prepared_params, *, tile_rows=512):
    """Mean of MLPDecoder's output Normal distribution.

    x: [B, T, C] or [N, C] float32.
    prepared_params: output of prepare_params().
    """
    p = prepared_params
    if x.ndim == 3:
        B, T, C = x.shape
        x2 = x.reshape(B * T, C)
    elif x.ndim == 2:
        x2 = x
    else:
        raise NotImplementedError("MLPDecoder supports only 2-D or 3-D inputs")

    N, cin = x2.shape
    hid_pad = p["w0"].shape[1]
    out = p["w2"].shape[1]
    out_dtype = x.dtype
    cd = jnp.dtype(p["w0"].dtype).itemsize        # compute dtype (bf16 = 2)
    xd = jnp.dtype(x2.dtype).itemsize             # f32 input
    od = jnp.dtype(out_dtype).itemsize

    # ---- generation-aware VMEM budget + explicit scoped limit --------------
    cap = _tpu_vmem_capacity_bytes()
    vmem_limit = min(cap // 2, 64 << 20)          # v7x: ~32 MiB, v5e/v6e: 64 MiB
    budget = int(vmem_limit * 0.8)                # headroom for compiler internals

    # resident weights, single-buffered (pl.Buffered(1))
    weight_bytes = ((cin * hid_pad + hid_pad * hid_pad + hid_pad * out) * cd
                    + (2 * hid_pad + out) * 4)

    def tile_bytes(t):
        # double-buffered x/out tiles + one tile worth of live intermediates
        return (2 * t * (cin * xd + out * od)
                + t * (cin * cd + 2 * hid_pad * 4 + out * 4))

    tm = min(int(tile_rows), _round_up(N, 8))
    tm = max(8, (tm // 8) * 8)
    while tm > 8 and weight_bytes + tile_bytes(tm) > budget:
        tm = max(8, _round_up(tm // 2, 8))
    # TODO(synk): if weight_bytes alone exceeds the budget (very large hidden
    # sizes, especially on v7x's 64 MiB VMEM), add a tiled-weights fallback
    # (extra "arbitrary" grid axis + f32 accumulator) instead of failing to fit.

    # v7x has 2 TensorCores: make sure the "parallel" row axis has >= 2 steps.
    if _is_v7x() and N > 8 and pl.cdiv(N, tm) < 2:
        tm = max(8, _round_up(pl.cdiv(N, 2), 8))

    grid = (pl.cdiv(N, tm),)

    flops = 2 * N * (cin * hid_pad + hid_pad * hid_pad + hid_pad * out)
    bytes_accessed = N * cin * xd + N * out * od + weight_bytes
    cost = pl.CostEstimate(flops=int(flops),
                           transcendentals=int(2 * N * hid_pad),
                           bytes_accessed=int(bytes_accessed))

    def build_and_run(single_buffer_weights):
        if single_buffer_weights:
            def wspec(shape):
                return pl.BlockSpec(shape, lambda i: (0, 0),
                                    pipeline_mode=pl.Buffered(1))
        else:
            def wspec(shape):
                return pl.BlockSpec(shape, lambda i: (0, 0))

        call = pl.pallas_call(
            _mlp_decoder_kernel,
            out_shape=jax.ShapeDtypeStruct((N, out), out_dtype),
            grid_spec=pltpu.PrefetchScalarGridSpec(
                num_scalar_prefetch=0,
                grid=grid,
                in_specs=[
                    pl.BlockSpec((tm, cin), lambda i: (i, 0)),   # x row tile (f32)
                    wspec((cin, hid_pad)),                       # W0 (resident)
                    wspec((1, hid_pad)),                         # b0
                    wspec((hid_pad, hid_pad)),                   # W1 (resident)
                    wspec((1, hid_pad)),                         # b1
                    wspec((hid_pad, out)),                       # W2 (resident)
                    wspec((1, out)),                             # b2
                ],
                out_specs=pl.BlockSpec((tm, out), lambda i: (i, 0)),
            ),
            compiler_params=pltpu.CompilerParams(
                dimension_semantics=("parallel",),
                vmem_limit_bytes=int(vmem_limit)),
            cost_estimate=cost,
        )
        return call(x2, p["w0"], p["b0"], p["w1"], p["b1"], p["w2"], p["b2"])

    try:
        mean2 = jax.block_until_ready(build_and_run(True))
    except Exception:
        # pipeline_mode=pl.Buffered(1) unsupported on this jax version:
        # fall back to default (double-buffered) weight specs.
        mean2 = build_and_run(False)

    if x.ndim == 3:
        mean2 = mean2.reshape(B, T, out)
    return mean2
    # TODO(synk): the PyTorch module wraps `mean` in
    # ContDist(Independent(Normal(mean, 1.0), 1)); distribution objects have no
    # Pallas equivalent — we return the mean (the only tensor computed).


# ---------------------------------------------------------------------------
# Deterministic synthetic parameters + pure-JAX reference
# ---------------------------------------------------------------------------
def init_params(key, input_size, hidden_size, output_size):
    """Weights stored pre-transposed as (in, out); PyTorch stores (out, in)."""
    ks = jax.random.split(key, 6)

    def lin(kw, kb, fan_in, fan_out):
        bound = 1.0 / jnp.sqrt(fan_in)
        w = jax.random.uniform(kw, (fan_in, fan_out), jnp.float32, -bound, bound)
        b = jax.random.uniform(kb, (fan_out,), jnp.float32, -bound, bound)
        return w, b

    w0, b0 = lin(ks[0], ks[1], input_size, hidden_size)
    w1, b1 = lin(ks[2], ks[3], hidden_size, hidden_size)
    w2, b2 = lin(ks[4], ks[5], hidden_size, output_size)
    return dict(w0=w0, b0=b0, w1=w1, b1=b1, w2=w2, b2=b2)


def _reference(x, p):
    x2 = x.reshape(-1, x.shape[-1])
    h = jnp.tanh(x2 @ p["w0"] + p["b0"])
    h = jnp.tanh(h @ p["w1"] + p["b1"])
    o = h @ p["w2"] + p["b2"]
    return o.reshape(x.shape[:-1] + (o.shape[-1],))


if __name__ == "__main__":
    # Small shapes consistent with the module's forward: 3-D input [B, T, C].
    B, T = 2, 8
    input_size, hidden_size, output_size = 32, 32, 16

    key = jax.random.PRNGKey(0)
    k_x, k_p = jax.random.split(key)
    x = jax.random.normal(k_x, (B, T, input_size), jnp.float32)
    params = init_params(k_p, input_size, hidden_size, output_size)

    prepared = prepare_params(params)            # one-time prep (cached by caller)
    mean = mlp_decoder_mean(x, prepared)
    mean = jax.block_until_ready(mean)

    ref = _reference(x, params)
    assert mean.shape == (B, T, output_size)
    # bf16 compute path -> loosened tolerance vs the f32 reference.
    assert jnp.allclose(mean, ref, atol=3e-2, rtol=3e-2), (
        float(jnp.max(jnp.abs(mean - ref))))

    print("KERNEL_OK")
</pallas_src>

<mosaic_0001>
module attributes {stable_mosaic.version = 11 : i64} {
  func.func @_mlp_decoder_kernel(%arg0: i32, %arg1: memref<16x32xf32, #tpu.memory_space<vmem>>, %arg2: memref<32x128xbf16, #tpu.memory_space<vmem>>, %arg3: memref<1x128xf32, #tpu.memory_space<vmem>>, %arg4: memref<128x128xbf16, #tpu.memory_space<vmem>>, %arg5: memref<1x128xf32, #tpu.memory_space<vmem>>, %arg6: memref<128x16xbf16, #tpu.memory_space<vmem>>, %arg7: memref<1x16xf32, #tpu.memory_space<vmem>>, %arg8: memref<16x16xf32, #tpu.memory_space<vmem>>) attributes {dimension_semantics = [#tpu.dimension_semantics<parallel>], iteration_bounds = array<i64: 1>, scalar_prefetch = 0 : i64, scratch_operands = 0 : i64, tpu.core_type = #tpu.core_type<tc>, window_params = [{transform_indices = @transform_0, window_bounds = array<i64: 16, 32>}, {pipeline_mode = #tpu.pipeline_mode<synchronous>, transform_indices = @transform_1, window_bounds = array<i64: 32, 128>}, {pipeline_mode = #tpu.pipeline_mode<synchronous>, transform_indices = @transform_2, window_bounds = array<i64: 1, 128>}, {pipeline_mode = #tpu.pipeline_mode<synchronous>, transform_indices = @transform_3, window_bounds = array<i64: 128, 128>}, {pipeline_mode = #tpu.pipeline_mode<synchronous>, transform_indices = @transform_4, window_bounds = array<i64: 1, 128>}, {pipeline_mode = #tpu.pipeline_mode<synchronous>, transform_indices = @transform_5, window_bounds = array<i64: 128, 16>}, {pipeline_mode = #tpu.pipeline_mode<synchronous>, transform_indices = @transform_6, window_bounds = array<i64: 1, 16>}, {transform_indices = @transform_7, window_bounds = array<i64: 16, 16>}]} {
    %c0 = arith.constant 0 : index
    %c0_0 = arith.constant 0 : index
    %0 = vector.load %arg1[%c0, %c0_0] : memref<16x32xf32, #tpu.memory_space<vmem>>, vector<16x32xf32>
    %1 = arith.truncf %0 : vector<16x32xf32> to vector<16x32xbf16>
    %c0_1 = arith.constant 0 : index
    %c0_2 = arith.constant 0 : index
    %2 = vector.load %arg2[%c0_1, %c0_2] : memref<32x128xbf16, #tpu.memory_space<vmem>>, vector<32x128xbf16>
    %cst = arith.constant dense<0.000000e+00> : vector<16x128xf32>
    %3 = tpu.matmul %1, %2, %cst {dimension_numbers = #tpu.dot_dimension_numbers<[1], [0], [0], [1], [0, 0, 1, 1], [], []>} : vector<16x32xbf16>, vector<32x128xbf16>, vector<16x128xf32> -> vector<16x128xf32>
    %c0_3 = arith.constant 0 : index
    %c0_4 = arith.constant 0 : index
    %4 = vector.load %arg3[%c0_3, %c0_4] : memref<1x128xf32, #tpu.memory_space<vmem>>, vector<1x128xf32>
    %5 = vector.broadcast %4 : vector<1x128xf32> to vector<16x128xf32>
    %6 = arith.addf %3, %5 : vector<16x128xf32>
    %7 = math.tanh %6 : vector<16x128xf32>
    %8 = arith.truncf %7 : vector<16x128xf32> to vector<16x128xbf16>
    %c0_5 = arith.constant 0 : index
    %c0_6 = arith.constant 0 : index
    %9 = vector.load %arg4[%c0_5, %c0_6] : memref<128x128xbf16, #tpu.memory_space<vmem>>, vector<128x128xbf16>
    %cst_7 = arith.constant dense<0.000000e+00> : vector<16x128xf32>
    %10 = tpu.matmul %8, %9, %cst_7 {dimension_numbers = #tpu.dot_dimension_numbers<[1], [0], [0], [1], [0, 0, 1, 1], [], []>} : vector<16x128xbf16>, vector<128x128xbf16>, vector<16x128xf32> -> vector<16x128xf32>
    %c0_8 = arith.constant 0 : index
    %c0_9 = arith.constant 0 : index
    %11 = vector.load %arg5[%c0_8, %c0_9] : memref<1x128xf32, #tpu.memory_space<vmem>>, vector<1x128xf32>
    %12 = vector.broadcast %11 : vector<1x128xf32> to vector<16x128xf32>
    %13 = arith.addf %10, %12 : vector<16x128xf32>
    %14 = math.tanh %13 : vector<16x128xf32>
    %15 = arith.truncf %14 : vector<16x128xf32> to vector<16x128xbf16>
    %c0_10 = arith.constant 0 : index
    %c0_11 = arith.constant 0 : index
    %16 = vector.load %arg6[%c0_10, %c0_11] : memref<128x16xbf16, #tpu.memory_space<vmem>>, vector<128x16xbf16>
    %cst_12 = arith.constant dense<0.000000e+00> : vector<16x16xf32>
    %17 = tpu.matmul %15, %16, %cst_12 {dimension_numbers = #tpu.dot_dimension_numbers<[1], [0], [0], [1], [0, 0, 1, 1], [], []>} : vector<16x128xbf16>, vector<128x16xbf16>, vector<16x16xf32> -> vector<16x16xf32>
    %c0_13 = arith.constant 0 : index
    %c0_14 = arith.constant 0 : index
    %18 = vector.load %arg7[%c0_13, %c0_14] : memref<1x16xf32, #tpu.memory_space<vmem>>, vector<1x16xf32>
    %19 = vector.broadcast %18 : vector<1x16xf32> to vector<16x16xf32>
    %20 = arith.addf %17, %19 : vector<16x16xf32>
    %c0_15 = arith.constant 0 : index
    %c0_16 = arith.constant 0 : index
    %21 = vector.load %arg8[%c0_15, %c0_16] : memref<16x16xf32, #tpu.memory_space<vmem>>, vector<16x16xf32>
    tpu.vector_store %arg8[%c0_15, %c0_16], %20 {strides = array<i32>} : memref<16x16xf32, #tpu.memory_space<vmem>>, vector<16x16xf32>,
    return
  }
  func.func @transform_0(%arg0: i32) -> (i32, i32) {
    %c0_i32 = arith.constant 0 : i32
    %c0_i32_0 = arith.constant 0 : i32
    return %arg0, %c0_i32 : i32, i32
  }
  func.func @transform_1(%arg0: i32) -> (i32, i32) {
    %c0_i32 = arith.constant 0 : i32
    %c0_i32_0 = arith.constant 0 : i32
    %c0_i32_1 = arith.constant 0 : i32
    return %c0_i32, %c0_i32_0 : i32, i32
  }
  func.func @transform_2(%arg0: i32) -> (i32, i32) {
    %c0_i32 = arith.constant 0 : i32
    %c0_i32_0 = arith.constant 0 : i32
    %c0_i32_1 = arith.constant 0 : i32
    return %c0_i32, %c0_i32_0 : i32, i32
  }
  func.func @transform_3(%arg0: i32) -> (i32, i32) {
    %c0_i32 = arith.constant 0 : i32
    %c0_i32_0 = arith.constant 0 : i32
    %c0_i32_1 = arith.constant 0 : i32
    return %c0_i32, %c0_i32_0 : i32, i32
  }
  func.func @transform_4(%arg0: i32) -> (i32, i32) {
    %c0_i32 = arith.constant 0 : i32
    %c0_i32_0 = arith.constant 0 : i32
    %c0_i32_1 = arith.constant 0 : i32
    return %c0_i32, %c0_i32_0 : i32, i32
  }
  func.func @transform_5(%arg0: i32) -> (i32, i32) {
    %c0_i32 = arith.constant 0 : i32
    %c0_i32_0 = arith.constant 0 : i32
    %c0_i32_1 = arith.constant 0 : i32
    return %c0_i32, %c0_i32_0 : i32, i32
  }
  func.func @transform_6(%arg0: i32) -> (i32, i32) {
    %c0_i32 = arith.constant 0 : i32
    %c0_i32_0 = arith.constant 0 : i32
    %c0_i32_1 = arith.constant 0 : i32
    return %c0_i32, %c0_i32_0 : i32, i32
  }
  func.func @transform_7(%arg0: i32) -> (i32, i32) {
    %c0_i32 = arith.constant 0 : i32
    %c0_i32_0 = arith.constant 0 : i32
    return %arg0, %c0_i32 : i32, i32
  }
}

module attributes {stable_mosaic.version = 11 : i64} {
  func.func @_mlp_decoder_kernel(%arg0: i32, %arg1: memref<16x32xf32, #tpu.memory_space<vmem>>, %arg2: memref<32x128xbf16, #tpu.memory_space<vmem>>, %arg3: memref<1x128xf32, #tpu.memory_space<vmem>>, %arg4: memref<128x128xbf16, #tpu.memory_space<vmem>>, %arg5: memref<1x128xf32, #tpu.memory_space<vmem>>, %arg6: memref<128x16xbf16, #tpu.memory_space<vmem>>, %arg7: memref<1x16xf32, #tpu.memory_space<vmem>>, %arg8: memref<16x16xf32, #tpu.memory_space<vmem>>) attributes {dimension_semantics = [#tpu.dimension_semantics<parallel>], iteration_bounds = array<i64: 1>, scalar_prefetch = 0 : i64, scratch_operands = 0 : i64, tpu.core_type = #tpu.core_type<tc>, window_params = [{transform_indices = @transform_0, window_bounds = array<i64: 16, 32>}, {pipeline_mode = #tpu.pipeline_mode<synchronous>, transform_indices = @transform_1, window_bounds = array<i64: 32, 128>}, {pipeline_mode = #tpu.pipeline_mode<synchronous>, transform_indices = @transform_2, window_bounds = array<i64: 1, 128>}, {pipeline_mode = #tpu.pipeline_mode<synchronous>, transform_indices = @transform_3, window_bounds = array<i64: 128, 128>}, {pipeline_mode = #tpu.pipeline_mode<synchronous>, transform_indices = @transform_4, window_bounds = array<i64: 1, 128>}, {pipeline_mode = #tpu.pipeline_mode<synchronous>, transform_indices = @transform_5, window_bounds = array<i64: 128, 16>}, {pipeline_mode = #tpu.pipeline_mode<synchronous>, transform_indices = @transform_6, window_bounds = array<i64: 1, 16>}, {transform_indices = @transform_7, window_bounds = array<i64: 16, 16>}]} {
    %c0 = arith.constant 0 : index
    %c0_0 = arith.constant 0 : index
    %0 = vector.load %arg1[%c0, %c0_0] : memref<16x32xf32, #tpu.memory_space<vmem>>, vector<16x32xf32>
    %1 = arith.truncf %0 : vector<16x32xf32> to vector<16x32xbf16>
    %c0_1 = arith.constant 0 : index
    %c0_2 = arith.constant 0 : index
    %2 = vector.load %arg2[%c0_1, %c0_2] : memref<32x128xbf16, #tpu.memory_space<vmem>>, vector<32x128xbf16>
    %cst = arith.constant dense<0.000000e+00> : vector<16x128xf32>
    %3 = tpu.matmul %1, %2, %cst {dimension_numbers = #tpu.dot_dimension_numbers<[1], [0], [0], [1], [0, 0, 1, 1], [], []>} : vector<16x32xbf16>, vector<32x128xbf16>, vector<16x128xf32> -> vector<16x128xf32>
    %c0_3 = arith.constant 0 : index
    %c0_4 = arith.constant 0 : index
    %4 = vector.load %arg3[%c0_3, %c0_4] : memref<1x128xf32, #tpu.memory_space<vmem>>, vector<1x128xf32>
    %5 = vector.broadcast %4 : vector<1x128xf32> to vector<16x128xf32>
    %6 = arith.addf %3, %5 : vector<16x128xf32>
    %7 = math.tanh %6 : vector<16x128xf32>
    %8 = arith.truncf %7 : vector<16x128xf32> to vector<16x128xbf16>
    %c0_5 = arith.constant 0 : index
    %c0_6 = arith.constant 0 : index
    %9 = vector.load %arg4[%c0_5, %c0_6] : memref<128x128xbf16, #tpu.memory_space<vmem>>, vector<128x128xbf16>
    %cst_7 = arith.constant dense<0.000000e+00> : vector<16x128xf32>
    %10 = tpu.matmul %8, %9, %cst_7 {dimension_numbers = #tpu.dot_dimension_numbers<[1], [0], [0], [1], [0, 0, 1, 1], [], []>} : vector<16x128xbf16>, vector<128x128xbf16>, vector<16x128xf32> -> vector<16x128xf32>
    %c0_8 = arith.constant 0 : index
    %c0_9 = arith.constant 0 : index
    %11 = vector.load %arg5[%c0_8, %c0_9] : memref<1x128xf32, #tpu.memory_space<vmem>>, vector<1x128xf32>
    %12 = vector.broadcast %11 : vector<1x128xf32> to vector<16x128xf32>
    %13 = arith.addf %10, %12 : vector<16x128xf32>
    %14 = math.tanh %13 : vector<16x128xf32>
    %15 = arith.truncf %14 : vector<16x128xf32> to vector<16x128xbf16>
    %c0_10 = arith.constant 0 : index
    %c0_11 = arith.constant 0 : index
    %16 = vector.load %arg6[%c0_10, %c0_11] : memref<128x16xbf16, #tpu.memory_space<vmem>>, vector<128x16xbf16>
    %cst_12 = arith.constant dense<0.000000e+00> : vector<16x16xf32>
    %17 = tpu.matmul %15, %16, %cst_12 {dimension_numbers = #tpu.dot_dimension_numbers<[1], [0], [0], [1], [0, 0, 1, 1], [], []>} : vector<16x128xbf16>, vector<128x16xbf16>, vector<16x16xf32> -> vector<16x16xf32>
    %c0_13 = arith.constant 0 : index
    %c0_14 = arith.constant 0 : index
    %18 = vector.load %arg7[%c0_13, %c0_14] : memref<1x16xf32, #tpu.memory_space<vmem>>, vector<1x16xf32>
    %19 = vector.broadcast %18 : vector<1x16xf32> to vector<16x16xf32>
    %20 = arith.addf %17, %19 : vector<16x16xf32>
    %c0_15 = arith.constant 0 : index
    %c0_16 = arith.constant 0 : index
    %21 = vector.load %arg8[%c0_15, %c0_16] : memref<16x16xf32, #tpu.memory_space<vmem>>, vector<16x16xf32>
    tpu.vector_store %arg8[%c0_15, %c0_16], %20 {strides = array<i32>} : memref<16x16xf32, #tpu.memory_space<vmem>>, vector<16x16xf32>,
    return
  }
  func.func @transform_0(%arg0: i32) -> (i32, i32) {
    %c0_i32 = arith.constant 0 : i32
    %c0_i32_0 = arith.constant 0 : i32
    return %arg0, %c0_i32 : i32, i32
  }
  func.func @transform_1(%arg0: i32) -> (i32, i32) {
    %c0_i32 = arith.constant 0 : i32
    %c0_i32_0 = arith.constant 0 : i32
    %c0_i32_1 = arith.constant 0 : i32
    return %c0_i32, %c0_i32_0 : i32, i32
  }
  func.func @transform_2(%arg0: i32) -> (i32, i32) {
    %c0_i32 = arith.constant 0 : i32
    %c0_i32_0 = arith.constant 0 : i32
    %c0_i32_1 = arith.constant 0 : i32
    return %c0_i32, %c0_i32_0 : i32, i32
  }
  func.func @transform_3(%arg0: i32) -> (i32, i32) {
    %c0_i32 = arith.constant 0 : i32
    %c0_i32_0 = arith.constant 0 : i32
    %c0_i32_1 = arith.constant 0 : i32
    return %c0_i32, %c0_i32_0 : i32, i32
  }
  func.func @transform_4(%arg0: i32) -> (i32, i32) {
    %c0_i32 = arith.constant 0 : i32
    %c0_i32_0 = arith.constant 0 : i32
    %c0_i32_1 = arith.constant 0 : i32
    return %c0_i32, %c0_i32_0 : i32, i32
  }
  func.func @transform_5(%arg0: i32) -> (i32, i32) {
    %c0_i32 = arith.constant 0 : i32
    %c0_i32_0 = arith.constant 0 : i32
    %c0_i32_1 = arith.constant 0 : i32
    return %c0_i32, %c0_i32_0 : i32, i32
  }
  func.func @transform_6(%arg0: i32) -> (i32, i32) {
    %c0_i32 = arith.constant 0 : i32
    %c0_i32_0 = arith.constant 0 : i32
    %c0_i32_1 = arith.constant 0 : i32
    return %c0_i32, %c0_i32_0 : i32, i32
  }
  func.func @transform_7(%arg0: i32) -> (i32, i32) {
    %c0_i32 = arith.constant 0 : i32
    %c0_i32_0 = arith.constant 0 : i32
    return %arg0, %c0_i32 : i32, i32
  }
}

</mosaic_0001>

<llo_original>
// kernel: tpu_custom_call.1
$region0: #{tpu_custom_call.1}
  #allocation0 [shape = 'u32[]', space=smem, size = 0x4, offset = 0x4, fixed_abs, tag = 'smem constant byte address 0x4 - core index']
  #allocation1 [shape = 'u32[72,128]{1,0:T(1,128)}', space=vmem, size = 0x9000, scoped, tag = 'internal scratch']
  %s0 = inlined_call_operand.hbm [shape: f32[16,32], index: 0, kind: input, shape index: {}]
  %s1 = inlined_call_operand.hbm [shape: bf16[32,128], index: 1, kind: input, shape index: {}]
  %s2 = inlined_call_operand.vmem [shape: f32[1,128], index: 2, kind: input, shape index: {}]
  %s3 = inlined_call_operand.vmem [shape: bf16[128,128], index: 3, kind: input, shape index: {}]
  %s4 = inlined_call_operand.vmem [shape: f32[1,128], index: 4, kind: input, shape index: {}]
  %s5 = inlined_call_operand.vmem [shape: bf16[128,16], index: 5, kind: input, shape index: {}]
  %s6 = inlined_call_operand.vmem [shape: f32[1,16], index: 6, kind: input, shape index: {}]
  %s7 = inlined_call_operand.hbm [shape: f32[16,16], index: 7, kind: output, shape index: {}]
  %s8 = sld [smem:[#allocation0]]
  $region46: #{tpu_custom_call.1} parent=0
    _
  %s10 = ssub.s32 1, %s8
  %s11 = scalar_select 0, %s10, %s8
  $region1: #{tpu_custom_call.1} parent=0
    #allocation2 [shape = 'u8[8192]{0}', space=vmem, size = 0x2000, scoped, tag = 'input window, operand 0, single buffered']
    #allocation3 [shape = 's32[1]{0}', space=sflag, size = 0x4, scoped, tag = 'scoped memory for tpu_custom_call.1']
    #allocation4 [shape = 's32[1]{0}', space=sflag, size = 0x4, scoped, tag = 'scoped memory for tpu_custom_call.1']
    #allocation5 [shape = 'u8[8192]{0}', space=vmem, size = 0x2000, scoped, tag = 'input window, operand 1, single buffered']
    #allocation6 [shape = 's32[1]{0}', space=sflag, size = 0x4, scoped, tag = 'scoped memory for tpu_custom_call.1']
    #allocation7 [shape = 'u8[8192]{0}', space=vmem, size = 0x2000, scoped, tag = 'output window, operand 0, single buffered']
    %12 = vsyncpa [#allocation3], 0
    %13 = vsyncpa [#allocation6], 0
    %14 = vsyncpa [#allocation4], 0
    // Predicated region
    $region2: #{tpu_custom_call.1} parent=1 // pred_check
      _
    $region3: #{tpu_custom_call.1} parent=1 // pred_check_branch
      %16 = sbr.rel (0) target = $region5
    $region4: #{tpu_custom_call.1} parent=1 // pred_region
      %18 = vsyncadd [#allocation3], 0
      %s19 = sshll.u32 %s0, 4
      %s20 = int_to_ptr.hbm [resolvable:$true] %s19
      %s21 = sshll.u32 [#allocation2], 4
      %s22 = int_to_ptr.vmem [resolvable:$true] %s21
      %27 = dma.hbm_to_vmem [thread:$0]  %s20, 256, %s22, [#allocation3], 128, 128, 8
    $region5: #{tpu_custom_call.1} parent=1 // pred_fallthru
      _
    // Predicated region
    $region6: #{tpu_custom_call.1} parent=1 // pred_check
      _
    $region7: #{tpu_custom_call.1} parent=1 // pred_check_branch
      %29 = sbr.rel (0) target = $region9
    $region8: #{tpu_custom_call.1} parent=1 // pred_region
      %31 = vsyncadd [#allocation6], 0
      %s32 = sshll.u32 %s1, 4
      %s33 = int_to_ptr.hbm [resolvable:$true] %s32
      %s34 = sshll.u32 [#allocation5], 4
      %s35 = int_to_ptr.vmem [resolvable:$true] %s34
      %40 = dma.hbm_to_vmem [thread:$0]  %s33, 256, %s35, [#allocation6], 64, 64, 4
    $region9: #{tpu_custom_call.1} parent=1 // pred_fallthru
      _
    // Predicated region
    $region10: #{tpu_custom_call.1} parent=1 // pred_check
      _
    $region11: #{tpu_custom_call.1} parent=1 // pred_check_branch
      %42 = sbr.rel (0) target = $region13
    $region12: #{tpu_custom_call.1} parent=1 // pred_region
      _
    $region13: #{tpu_custom_call.1} parent=1 // pred_fallthru
      _
    // Predicated region
    $region14: #{tpu_custom_call.1} parent=1 // pred_check
      _
    $region15: #{tpu_custom_call.1} parent=1 // pred_check_branch
      %44 = sbr.rel (0) target = $region17
    $region16: #{tpu_custom_call.1} parent=1 // pred_region
      _
    $region17: #{tpu_custom_call.1} parent=1 // pred_fallthru
      _
    // Predicated region
    $region18: #{tpu_custom_call.1} parent=1 // pred_check
      _
    $region19: #{tpu_custom_call.1} parent=1 // pred_check_branch
      %46 = sbr.rel (0) target = $region21
    $region20: #{tpu_custom_call.1} parent=1 // pred_region
      _
    $region21: #{tpu_custom_call.1} parent=1 // pred_fallthru
      _
    // Predicated region
    $region22: #{tpu_custom_call.1} parent=1 // pred_check
      _
    $region23: #{tpu_custom_call.1} parent=1 // pred_check_branch
      %48 = sbr.rel (0) target = $region25
    $region24: #{tpu_custom_call.1} parent=1 // pred_region
      _
    $region25: #{tpu_custom_call.1} parent=1 // pred_fallthru
      _
    // Predicated region
    $region26: #{tpu_custom_call.1} parent=1 // pred_check
      _
    $region27: #{tpu_custom_call.1} parent=1 // pred_check_branch
      %50 = sbr.rel (0) target = $region29
    $region28: #{tpu_custom_call.1} parent=1 // pred_region
      _
    $region29: #{tpu_custom_call.1} parent=1 // pred_fallthru
      _
    // Predicated region
    $region30: #{tpu_custom_call.1} parent=1 // pred_check
      _
    $region31: #{tpu_custom_call.1} parent=1 // pred_check_branch
      %52 = sbr.rel (0) target = $region33
    $region32: #{tpu_custom_call.1} parent=1 // pred_region
      %54 = dma.done [#allocation3], 256
    $region33: #{tpu_custom_call.1} parent=1 // pred_fallthru
      _
    // Predicated region
    $region34: #{tpu_custom_call.1} parent=1 // pred_check
      _
    $region35: #{tpu_custom_call.1} parent=1 // pred_check_branch
      %56 = sbr.rel (0) target = $region37
    $region36: #{tpu_custom_call.1} parent=1 // pred_region
      %58 = dma.done [#allocation6], 256
    $region37: #{tpu_custom_call.1} parent=1 // pred_fallthru
      _
    %v60 = vld [vmem:[#allocation2] sm:$0xff]
    %v61 = vld [vmem:[#allocation2 + $0x8] sm:$0xff]
    %v62 = vpack.c.bf16 %v61, %v60
    %v63 = vld [vmem:[#allocation5] sm:$0xf]
    %v64 = vld [vmem:[#allocation5 + $0x4] sm:$0xf]
    %v65 = vld [vmem:[#allocation5 + $0x8] sm:$0xf]
    %v66 = vld [vmem:[#allocation5 + $0xc] sm:$0xf]
    %v67 = vld [vmem:[%s2] sm:$0x1]
    %v69 = vperm.slane %v67, 0
    %v75 = vunpack.c.l.b16 %v63
    %v76 = vunpack.c.l.b16 %v64
    %v77 = vunpack.c.l.b16 %v65
    %v78 = vunpack.c.l.b16 %v66
    %v79 = vpack.c.b16 %v76, %v75
    %v80 = vpack.c.b16 %v78, %v77
    %vm83 = vcmask 261120
    %v85 = vsel %vm83, %v62, 0
    %87 = vmatpush.bf16.msra.mxu0 0
    %88 = vmatpush.bf16.msra.mxu0 0
    %89 = vmatpush.bf16.msra.mxu0 0
    %90 = vmatpush.bf16.msra.mxu0 0
    %91 = vmatpush.bf16.msra.mxu0 0
    %92 = vmatpush.bf16.msra.mxu0 0
    %93 = vmatpush.bf16.msra.mxu0 %v80
    %94 = vmatpush.bf16.msra.mxu0 %v79
    %95 = vmatmul.bf16.gmra.mxu0 %v85
    %v96 = vpop.f32.mrf.mxu0
    %v97 = vadd.f32 %v69, %v96
    %v98 = vpop.f32.mrf.mxu0
    %v99 = vadd.f32 %v69, %v98
    %100 = vdwg.mxu0
    %v101 = vtanh.pop %v97
    %v102 = vtanh.pop %v99
    %v103 = vpack.c.bf16 %v102, %v101
    %v104 = vld [vmem:[%s3] sm:$0xf]
    %v105 = vld [vmem:[%s3 + $0x4] sm:$0xf]
    %v106 = vld [vmem:[%s3 + $0x8] sm:$0xf]
    %v107 = vld [vmem:[%s3 + $0xc] sm:$0xf]
    %v108 = vld [vmem:[%s3 + $0x10] sm:$0xf]
    %v109 = vld [vmem:[%s3 + $0x14] sm:$0xf]
    %v110 = vld [vmem:[%s3 + $0x18] sm:$0xf]
    %v111 = vld [vmem:[%s3 + $0x1c] sm:$0xf]
    %v112 = vld [vmem:[%s3 + $0x20] sm:$0xf]
    %v113 = vld [vmem:[%s3 + $0x24] sm:$0xf]
    %v114 = vld [vmem:[%s3 + $0x28] sm:$0xf]
    %v115 = vld [vmem:[%s3 + $0x2c] sm:$0xf]
    %v116 = vld [vmem:[%s3 + $0x30] sm:$0xf]
    %v117 = vld [vmem:[%s3 + $0x34] sm:$0xf]
    %v118 = vld [vmem:[%s3 + $0x38] sm:$0xf]
    %v119 = vld [vmem:[%s3 + $0x3c] sm:$0xf]
    %v120 = vld [vmem:[%s4] sm:$0x1]
    %v122 = vperm.slane %v120, 0
    %v140 = vunpack.c.l.b16 %v104
    %v141 = vunpack.c.l.b16 %v105
    %v142 = vunpack.c.l.b16 %v106
    %v143 = vunpack.c.l.b16 %v107
    %v144 = vunpack.c.l.b16 %v108
    %v145 = vunpack.c.l.b16 %v109
    %v146 = vunpack.c.l.b16 %v110
    %v147 = vunpack.c.l.b16 %v111
    %v148 = vunpack.c.l.b16 %v112
    %v149 = vunpack.c.l.b16 %v113
    %v150 = vunpack.c.l.b16 %v114
    %v151 = vunpack.c.l.b16 %v115
    %v152 = vunpack.c.l.b16 %v116
    %v153 = vunpack.c.l.b16 %v117
    %v154 = vunpack.c.l.b16 %v118
    %v155 = vunpack.c.l.b16 %v119
    %v156 = vpack.c.b16 %v141, %v140
    %v157 = vpack.c.b16 %v143, %v142
    %v158 = vpack.c.b16 %v145, %v144
    %v159 = vpack.c.b16 %v147, %v146
    %v160 = vpack.c.b16 %v149, %v148
    %v161 = vpack.c.b16 %v151, %v150
    %v162 = vpack.c.b16 %v153, %v152
    %v163 = vpack.c.b16 %v155, %v154
    %172 = vmatpush.bf16.msra.mxu0 %v163
    %173 = vmatpush.bf16.msra.mxu0 %v162
    %174 = vmatpush.bf16.msra.mxu0 %v161
    %175 = vmatpush.bf16.msra.mxu0 %v160
    %176 = vmatpush.bf16.msra.mxu0 %v159
    %177 = vmatpush.bf16.msra.mxu0 %v158
    %178 = vmatpush.bf16.msra.mxu0 %v157
    %179 = vmatpush.bf16.msra.mxu0 %v156
    %180 = vmatmul.bf16.gmra.mxu0 %v103
    %v181 = vpop.f32.mrf.mxu0
    %v182 = vadd.f32 %v122, %v181
    %v183 = vpop.f32.mrf.mxu0
    %v184 = vadd.f32 %v122, %v183
    %185 = vdwg.mxu0
    %v186 = vtanh.pop %v182
    %v187 = vtanh.pop %v184
    %v188 = vpack.c.bf16 %v187, %v186
    %v189 = vld [vmem:[%s5] sm:$0xf]
    %v190 = vld [vmem:[%s5 + $0x4] sm:$0xf]
    %v191 = vld [vmem:[%s5 + $0x8] sm:$0xf]
    %v192 = vld [vmem:[%s5 + $0xc] sm:$0xf]
    %v193 = vld [vmem:[%s5 + $0x10] sm:$0xf]
    %v194 = vld [vmem:[%s5 + $0x14] sm:$0xf]
    %v195 = vld [vmem:[%s5 + $0x18] sm:$0xf]
    %v196 = vld [vmem:[%s5 + $0x1c] sm:$0xf]
    %v197 = vld [vmem:[%s5 + $0x20] sm:$0xf]
    %v198 = vld [vmem:[%s5 + $0x24] sm:$0xf]
    %v199 = vld [vmem:[%s5 + $0x28] sm:$0xf]
    %v200 = vld [vmem:[%s5 + $0x2c] sm:$0xf]
    %v201 = vld [vmem:[%s5 + $0x30] sm:$0xf]
    %v202 = vld [vmem:[%s5 + $0x34] sm:$0xf]
    %v203 = vld [vmem:[%s5 + $0x38] sm:$0xf]
    %v204 = vld [vmem:[%s5 + $0x3c] sm:$0xf]
    %v205 = vld [vmem:[%s6] sm:$0x1]
    %v207 = vperm.slane %v205, 0
    %v225 = vunpack.c.l.b16 %v189
    %v226 = vunpack.c.l.b16 %v190
    %v227 = vunpack.c.l.b16 %v191
    %v228 = vunpack.c.l.b16 %v192
    %v229 = vunpack.c.l.b16 %v193
    %v230 = vunpack.c.l.b16 %v194
    %v231 = vunpack.c.l.b16 %v195
    %v232 = vunpack.c.l.b16 %v196
    %v233 = vunpack.c.l.b16 %v197
    %v234 = vunpack.c.l.b16 %v198
    %v235 = vunpack.c.l.b16 %v199
    %v236 = vunpack.c.l.b16 %v200
    %v237 = vunpack.c.l.b16 %v201
    %v238 = vunpack.c.l.b16 %v202
    %v239 = vunpack.c.l.b16 %v203
    %v240 = vunpack.c.l.b16 %v204
    %v241 = vpack.c.b16 %v226, %v225
    %v242 = vpack.c.b16 %v228, %v227
    %v243 = vpack.c.b16 %v230, %v229
    %v244 = vpack.c.b16 %v232, %v231
    %v245 = vpack.c.b16 %v234, %v233
    %v246 = vpack.c.b16 %v236, %v235
    %v247 = vpack.c.b16 %v238, %v237
    %v248 = vpack.c.b16 %v240, %v239
    %257 = vmatpush.bf16.msra.mxu0 %v248
    %258 = vmatpush.bf16.msra.mxu0 %v247
    %259 = vmatpush.bf16.msra.mxu0 %v246
    %260 = vmatpush.bf16.msra.mxu0 %v245
    %261 = vmatpush.bf16.msra.mxu0 %v244
    %262 = vmatpush.bf16.msra.mxu0 %v243
    %263 = vmatpush.bf16.msra.mxu0 %v242
    %264 = vmatpush.bf16.msra.mxu0 %v241
    %265 = vmatmul.bf16.gmra.mxu0 %v188
    %v266 = vpop.f32.mrf.mxu0
    %v267 = vadd.f32 %v207, %v266
    %v268 = vpop.f32.mrf.mxu0
    %v269 = vadd.f32 %v207, %v268
    %270 = vdwg.mxu0
    %vm271 = vcmask 130048
    %272 = vst.msk [vmem:[#allocation7] sm:$0xff] %vm271, %v267
    %273 = vst.msk [vmem:[#allocation7 + $0x8] sm:$0xff] %vm271, %v269
    // Predicated region
    $region38: #{tpu_custom_call.1} parent=1 // pred_check
      _
    $region39: #{tpu_custom_call.1} parent=1 // pred_check_branch
      %275 = sbr.rel (0) target = $region41
    $region40: #{tpu_custom_call.1} parent=1 // pred_region
      %277 = vsyncadd [#allocation4], 0
      %s278 = sshll.u32 [#allocation7], 4
      %s279 = int_to_ptr.vmem [resolvable:$true] %s278
      %s280 = sshll.u32 %s7, 4
      %s281 = int_to_ptr.hbm [resolvable:$true] %s280
      %286 = dma.vmem_to_hbm [thread:$0]  %s279, 256, %s281, [#allocation4], 128, 128, 8
    $region41: #{tpu_custom_call.1} parent=1 // pred_fallthru
      _
    // Predicated region
    $region42: #{tpu_custom_call.1} parent=1 // pred_check
      _
    $region43: #{tpu_custom_call.1} parent=1 // pred_check_branch
      %288 = sbr.rel (0) target = $region45
    $region44: #{tpu_custom_call.1} parent=1 // pred_region
      %290 = dma.done [#allocation4], 256
    $region45: #{tpu_custom_call.1} parent=1 // pred_fallthru
      _
    %291 = vsyncpa [#allocation3], 1
    %292 = vsyncpa [#allocation6], 1
    %293 = vsyncpa [#allocation4], 1

// kernel: tpu_custom_call.1
$region0: #{tpu_custom_call.1}
  #allocation0 [shape = 'u32[]', space=smem, size = 0x4, offset = 0x4, fixed_abs, tag = 'smem constant byte address 0x4 - core index']
  #allocation1 [shape = 'u32[72,128]{1,0:T(1,128)}', space=vmem, size = 0x9000, scoped, tag = 'internal scratch']
  %s0 = inlined_call_operand.hbm [shape: f32[16,32], index: 0, kind: input, shape index: {}]
  %s1 = inlined_call_operand.hbm [shape: bf16[32,128], index: 1, kind: input, shape index: {}]
  %s2 = inlined_call_operand.vmem [shape: f32[1,128], index: 2, kind: input, shape index: {}]
  %s3 = inlined_call_operand.vmem [shape: bf16[128,128], index: 3, kind: input, shape index: {}]
  %s4 = inlined_call_operand.vmem [shape: f32[1,128], index: 4, kind: input, shape index: {}]
  %s5 = inlined_call_operand.vmem [shape: bf16[128,16], index: 5, kind: input, shape index: {}]
  %s6 = inlined_call_operand.vmem [shape: f32[1,16], index: 6, kind: input, shape index: {}]
  %s7 = inlined_call_operand.hbm [shape: f32[16,16], index: 7, kind: output, shape index: {}]
  %s8 = sld [smem:[#allocation0]]
  $region46: #{tpu_custom_call.1} parent=0
    _
  %s10 = ssub.s32 1, %s8
  %s11 = scalar_select 0, %s10, %s8
  $region1: #{tpu_custom_call.1} parent=0
    #allocation2 [shape = 'u8[8192]{0}', space=vmem, size = 0x2000, scoped, tag = 'input window, operand 0, single buffered']
    #allocation3 [shape = 's32[1]{0}', space=sflag, size = 0x4, scoped, tag = 'scoped memory for tpu_custom_call.1']
    #allocation4 [shape = 's32[1]{0}', space=sflag, size = 0x4, scoped, tag = 'scoped memory for tpu_custom_call.1']
    #allocation5 [shape = 'u8[8192]{0}', space=vmem, size = 0x2000, scoped, tag = 'input window, operand 1, single buffered']
    #allocation6 [shape = 's32[1]{0}', space=sflag, size = 0x4, scoped, tag = 'scoped memory for tpu_custom_call.1']
    #allocation7 [shape = 'u8[8192]{0}', space=vmem, size = 0x2000, scoped, tag = 'output window, operand 0, single buffered']
    %12 = vsyncpa [#allocation3], 0
    %13 = vsyncpa [#allocation6], 0
    %14 = vsyncpa [#allocation4], 0
    // Predicated region
    $region2: #{tpu_custom_call.1} parent=1 // pred_check
      _
    $region3: #{tpu_custom_call.1} parent=1 // pred_check_branch
      %16 = sbr.rel (0) target = $region5
    $region4: #{tpu_custom_call.1} parent=1 // pred_region
      %18 = vsyncadd [#allocation3], 0
      %s19 = sshll.u32 %s0, 4
      %s20 = int_to_ptr.hbm [resolvable:$true] %s19
      %s21 = sshll.u32 [#allocation2], 4
      %s22 = int_to_ptr.vmem [resolvable:$true] %s21
      %27 = dma.hbm_to_vmem [thread:$0]  %s20, 256, %s22, [#allocation3], 128, 128, 8
    $region5: #{tpu_custom_call.1} parent=1 // pred_fallthru
      _
    // Predicated region
    $region6: #{tpu_custom_call.1} parent=1 // pred_check
      _
    $region7: #{tpu_custom_call.1} parent=1 // pred_check_branch
      %29 = sbr.rel (0) target = $region9
    $region8: #{tpu_custom_call.1} parent=1 // pred_region
      %31 = vsyncadd [#allocation6], 0
      %s32 = sshll.u32 %s1, 4
      %s33 = int_to_ptr.hbm [resolvable:$true] %s32
      %s34 = sshll.u32 [#allocation5], 4
      %s35 = int_to_ptr.vmem [resolvable:$true] %s34
      %40 = dma.hbm_to_vmem [thread:$0]  %s33, 256, %s35, [#allocation6], 64, 64, 4
    $region9: #{tpu_custom_call.1} parent=1 // pred_fallthru
      _
    // Predicated region
    $region10: #{tpu_custom_call.1} parent=1 // pred_check
      _
    $region11: #{tpu_custom_call.1} parent=1 // pred_check_branch
      %42 = sbr.rel (0) target = $region13
    $region12: #{tpu_custom_call.1} parent=1 // pred_region
      _
    $region13: #{tpu_custom_call.1} parent=1 // pred_fallthru
      _
    // Predicated region
    $region14: #{tpu_custom_call.1} parent=1 // pred_check
      _
    $region15: #{tpu_custom_call.1} parent=1 // pred_check_branch
      %44 = sbr.rel (0) target = $region17
    $region16: #{tpu_custom_call.1} parent=1 // pred_region
      _
    $region17: #{tpu_custom_call.1} parent=1 // pred_fallthru
      _
    // Predicated region
    $region18: #{tpu_custom_call.1} parent=1 // pred_check
      _
    $region19: #{tpu_custom_call.1} parent=1 // pred_check_branch
      %46 = sbr.rel (0) target = $region21
    $region20: #{tpu_custom_call.1} parent=1 // pred_region
      _
    $region21: #{tpu_custom_call.1} parent=1 // pred_fallthru
      _
    // Predicated region
    $region22: #{tpu_custom_call.1} parent=1 // pred_check
      _
    $region23: #{tpu_custom_call.1} parent=1 // pred_check_branch
      %48 = sbr.rel (0) target = $region25
    $region24: #{tpu_custom_call.1} parent=1 // pred_region
      _
    $region25: #{tpu_custom_call.1} parent=1 // pred_fallthru
      _
    // Predicated region
    $region26: #{tpu_custom_call.1} parent=1 // pred_check
      _
    $region27: #{tpu_custom_call.1} parent=1 // pred_check_branch
      %50 = sbr.rel (0) target = $region29
    $region28: #{tpu_custom_call.1} parent=1 // pred_region
      _
    $region29: #{tpu_custom_call.1} parent=1 // pred_fallthru
      _
    // Predicated region
    $region30: #{tpu_custom_call.1} parent=1 // pred_check
      _
    $region31: #{tpu_custom_call.1} parent=1 // pred_check_branch
      %52 = sbr.rel (0) target = $region33
    $region32: #{tpu_custom_call.1} parent=1 // pred_region
      %54 = dma.done [#allocation3], 256
    $region33: #{tpu_custom_call.1} parent=1 // pred_fallthru
      _
    // Predicated region
    $region34: #{tpu_custom_call.1} parent=1 // pred_check
      _
    $region35: #{tpu_custom_call.1} parent=1 // pred_check_branch
      %56 = sbr.rel (0) target = $region37
    $region36: #{tpu_custom_call.1} parent=1 // pred_region
      %58 = dma.done [#allocation6], 256
    $region37: #{tpu_custom_call.1} parent=1 // pred_fallthru
      _
    %v60 = vld [vmem:[#allocation2] sm:$0xff]
    %v61 = vld [vmem:[#allocation2 + $0x8] sm:$0xff]
    %v62 = vpack.c.bf16 %v61, %v60
    %v63 = vld [vmem:[#allocation5] sm:$0xf]
    %v64 = vld [vmem:[#allocation5 + $0x4] sm:$0xf]
    %v65 = vld [vmem:[#allocation5 + $0x8] sm:$0xf]
    %v66 = vld [vmem:[#allocation5 + $0xc] sm:$0xf]
    %v67 = vld [vmem:[%s2] sm:$0x1]
    %v69 = vperm.slane %v67, 0
    %v75 = vunpack.c.l.b16 %v63
    %v76 = vunpack.c.l.b16 %v64
    %v77 = vunpack.c.l.b16 %v65
    %v78 = vunpack.c.l.b16 %v66
    %v79 = vpack.c.b16 %v76, %v75
    %v80 = vpack.c.b16 %v78, %v77
    %vm83 = vcmask 261120
    %v85 = vsel %vm83, %v62, 0
    %87 = vmatpush.bf16.msra.mxu0 0
    %88 = vmatpush.bf16.msra.mxu0 0
    %89 = vmatpush.bf16.msra.mxu0 0
    %90 = vmatpush.bf16.msra.mxu0 0
    %91 = vmatpush.bf16.msra.mxu0 0
    %92 = vmatpush.bf16.msra.mxu0 0
    %93 = vmatpush.bf16.msra.mxu0 %v80
    %94 = vmatpush.bf16.msra.mxu0 %v79
    %95 = vmatmul.bf16.gmra.mxu0 %v85
    %v96 = vpop.f32.mrf.mxu0
    %v97 = vadd.f32 %v69, %v96
    %v98 = vpop.f32.mrf.mxu0
    %v99 = vadd.f32 %v69, %v98
    %100 = vdwg.mxu0
    %v101 = vtanh.pop %v97
    %v102 = vtanh.pop %v99
    %v103 = vpack.c.bf16 %v102, %v101
    %v104 = vld [vmem:[%s3] sm:$0xf]
    %v105 = vld [vmem:[%s3 + $0x4] sm:$0xf]
    %v106 = vld [vmem:[%s3 + $0x8] sm:$0xf]
    %v107 = vld [vmem:[%s3 + $0xc] sm:$0xf]
    %v108 = vld [vmem:[%s3 + $0x10] sm:$0xf]
    %v109 = vld [vmem:[%s3 + $0x14] sm:$0xf]
    %v110 = vld [vmem:[%s3 + $0x18] sm:$0xf]
    %v111 = vld [vmem:[%s3 + $0x1c] sm:$0xf]
    %v112 = vld [vmem:[%s3 + $0x20] sm:$0xf]
    %v113 = vld [vmem:[%s3 + $0x24] sm:$0xf]
    %v114 = vld [vmem:[%s3 + $0x28] sm:$0xf]
    %v115 = vld [vmem:[%s3 + $0x2c] sm:$0xf]
    %v116 = vld [vmem:[%s3 + $0x30] sm:$0xf]
    %v117 = vld [vmem:[%s3 + $0x34] sm:$0xf]
    %v118 = vld [vmem:[%s3 + $0x38] sm:$0xf]
    %v119 = vld [vmem:[%s3 + $0x3c] sm:$0xf]
    %v120 = vld [vmem:[%s4] sm:$0x1]
    %v122 = vperm.slane %v120, 0
    %v140 = vunpack.c.l.b16 %v104
    %v141 = vunpack.c.l.b16 %v105
    %v142 = vunpack.c.l.b16 %v106
    %v143 = vunpack.c.l.b16 %v107
    %v144 = vunpack.c.l.b16 %v108
    %v145 = vunpack.c.l.b16 %v109
    %v146 = vunpack.c.l.b16 %v110
    %v147 = vunpack.c.l.b16 %v111
    %v148 = vunpack.c.l.b16 %v112
    %v149 = vunpack.c.l.b16 %v113
    %v150 = vunpack.c.l.b16 %v114
    %v151 = vunpack.c.l.b16 %v115
    %v152 = vunpack.c.l.b16 %v116
    %v153 = vunpack.c.l.b16 %v117
    %v154 = vunpack.c.l.b16 %v118
    %v155 = vunpack.c.l.b16 %v119
    %v156 = vpack.c.b16 %v141, %v140
    %v157 = vpack.c.b16 %v143, %v142
    %v158 = vpack.c.b16 %v145, %v144
    %v159 = vpack.c.b16 %v147, %v146
    %v160 = vpack.c.b16 %v149, %v148
    %v161 = vpack.c.b16 %v151, %v150
    %v162 = vpack.c.b16 %v153, %v152
    %v163 = vpack.c.b16 %v155, %v154
    %172 = vmatpush.bf16.msra.mxu0 %v163
    %173 = vmatpush.bf16.msra.mxu0 %v162
    %174 = vmatpush.bf16.msra.mxu0 %v161
    %175 = vmatpush.bf16.msra.mxu0 %v160
    %176 = vmatpush.bf16.msra.mxu0 %v159
    %177 = vmatpush.bf16.msra.mxu0 %v158
    %178 = vmatpush.bf16.msra.mxu0 %v157
    %179 = vmatpush.bf16.msra.mxu0 %v156
    %180 = vmatmul.bf16.gmra.mxu0 %v103
    %v181 = vpop.f32.mrf.mxu0
    %v182 = vadd.f32 %v122, %v181
    %v183 = vpop.f32.mrf.mxu0
    %v184 = vadd.f32 %v122, %v183
    %185 = vdwg.mxu0
    %v186 = vtanh.pop %v182
    %v187 = vtanh.pop %v184
    %v188 = vpack.c.bf16 %v187, %v186
    %v189 = vld [vmem:[%s5] sm:$0xf]
    %v190 = vld [vmem:[%s5 + $0x4] sm:$0xf]
    %v191 = vld [vmem:[%s5 + $0x8] sm:$0xf]
    %v192 = vld [vmem:[%s5 + $0xc] sm:$0xf]
    %v193 = vld [vmem:[%s5 + $0x10] sm:$0xf]
    %v194 = vld [vmem:[%s5 + $0x14] sm:$0xf]
    %v195 = vld [vmem:[%s5 + $0x18] sm:$0xf]
    %v196 = vld [vmem:[%s5 + $0x1c] sm:$0xf]
    %v197 = vld [vmem:[%s5 + $0x20] sm:$0xf]
    %v198 = vld [vmem:[%s5 + $0x24] sm:$0xf]
    %v199 = vld [vmem:[%s5 + $0x28] sm:$0xf]
    %v200 = vld [vmem:[%s5 + $0x2c] sm:$0xf]
    %v201 = vld [vmem:[%s5 + $0x30] sm:$0xf]
    %v202 = vld [vmem:[%s5 + $0x34] sm:$0xf]
    %v203 = vld [vmem:[%s5 + $0x38] sm:$0xf]
    %v204 = vld [vmem:[%s5 + $0x3c] sm:$0xf]
    %v205 = vld [vmem:[%s6] sm:$0x1]
    %v207 = vperm.slane %v205, 0
    %v225 = vunpack.c.l.b16 %v189
    %v226 = vunpack.c.l.b16 %v190
    %v227 = vunpack.c.l.b16 %v191
    %v228 = vunpack.c.l.b16 %v192
    %v229 = vunpack.c.l.b16 %v193
    %v230 = vunpack.c.l.b16 %v194
    %v231 = vunpack.c.l.b16 %v195
    %v232 = vunpack.c.l.b16 %v196
    %v233 = vunpack.c.l.b16 %v197
    %v234 = vunpack.c.l.b16 %v198
    %v235 = vunpack.c.l.b16 %v199
    %v236 = vunpack.c.l.b16 %v200
    %v237 = vunpack.c.l.b16 %v201
    %v238 = vunpack.c.l.b16 %v202
    %v239 = vunpack.c.l.b16 %v203
    %v240 = vunpack.c.l.b16 %v204
    %v241 = vpack.c.b16 %v226, %v225
    %v242 = vpack.c.b16 %v228, %v227
    %v243 = vpack.c.b16 %v230, %v229
    %v244 = vpack.c.b16 %v232, %v231
    %v245 = vpack.c.b16 %v234, %v233
    %v246 = vpack.c.b16 %v236, %v235
    %v247 = vpack.c.b16 %v238, %v237
    %v248 = vpack.c.b16 %v240, %v239
    %257 = vmatpush.bf16.msra.mxu0 %v248
    %258 = vmatpush.bf16.msra.mxu0 %v247
    %259 = vmatpush.bf16.msra.mxu0 %v246
    %260 = vmatpush.bf16.msra.mxu0 %v245
    %261 = vmatpush.bf16.msra.mxu0 %v244
    %262 = vmatpush.bf16.msra.mxu0 %v243
    %263 = vmatpush.bf16.msra.mxu0 %v242
    %264 = vmatpush.bf16.msra.mxu0 %v241
    %265 = vmatmul.bf16.gmra.mxu0 %v188
    %v266 = vpop.f32.mrf.mxu0
    %v267 = vadd.f32 %v207, %v266
    %v268 = vpop.f32.mrf.mxu0
    %v269 = vadd.f32 %v207, %v268
    %270 = vdwg.mxu0
    %vm271 = vcmask 130048
    %272 = vst.msk [vmem:[#allocation7] sm:$0xff] %vm271, %v267
    %273 = vst.msk [vmem:[#allocation7 + $0x8] sm:$0xff] %vm271, %v269
    // Predicated region
    $region38: #{tpu_custom_call.1} parent=1 // pred_check
      _
    $region39: #{tpu_custom_call.1} parent=1 // pred_check_branch
      %275 = sbr.rel (0) target = $region41
    $region40: #{tpu_custom_call.1} parent=1 // pred_region
      %277 = vsyncadd [#allocation4], 0
      %s278 = sshll.u32 [#allocation7], 4
      %s279 = int_to_ptr.vmem [resolvable:$true] %s278
      %s280 = sshll.u32 %s7, 4
      %s281 = int_to_ptr.hbm [resolvable:$true] %s280
      %286 = dma.vmem_to_hbm [thread:$0]  %s279, 256, %s281, [#allocation4], 128, 128, 8
    $region41: #{tpu_custom_call.1} parent=1 // pred_fallthru
      _
    // Predicated region
    $region42: #{tpu_custom_call.1} parent=1 // pred_check
      _
    $region43: #{tpu_custom_call.1} parent=1 // pred_check_branch
      %288 = sbr.rel (0) target = $region45
    $region44: #{tpu_custom_call.1} parent=1 // pred_region
      %290 = dma.done [#allocation4], 256
    $region45: #{tpu_custom_call.1} parent=1 // pred_fallthru
      _
    %291 = vsyncpa [#allocation3], 1
    %292 = vsyncpa [#allocation6], 1
    %293 = vsyncpa [#allocation4], 1

</llo_original>
